<compile_context>
chip_gen: v7x
topology: tpu7x:2x2x1
jax: 0.10.0
libtpu: 0.0.40
codegen_flags: <defaults>
</compile_context>

<pallas_src>
import functools

import jax
import jax.numpy as jnp
from jax.experimental import pallas as pl
from jax.experimental.pallas import tpu as pltpu

_UNROLL = 8  # DMA descriptor-issue unroll factor (T is always a multiple of 8)


def _qlora_embed_kernel(idx_ref, base_hbm, a_ref, b_ref, out_ref,
                        base_buf, sem, *, block_tokens):
    """One grid step handles T = block_tokens tokens.

    idx_ref : (N_pad,) int32 in SMEM (scalar prefetch)
    base_hbm: (V, D) base embedding table, left in HBM (pl.ANY)
    a_ref   : (T, r) gathered lora_A rows for this block (auto-pipelined)
    b_ref   : (r, D) lora_B * scaling, resident in VMEM
    out_ref : (T, D) output block (auto-pipelined writeback)
    base_buf: (2, T, D) VMEM scratch, double-buffered across grid steps
    sem     : (2,) DMA semaphores, one per base_buf slot
    """
    T = block_tokens
    c = pl.program_id(0)          # split axis ("parallel": v7x TC split)
    i = pl.program_id(1)          # block axis within split ("arbitrary")
    n_i = pl.num_programs(1)
    blk = c * n_i + i             # global token-block index
    slot = i % 2

    def start_gather(block_idx, buf_slot):
        # Issue T row-gather DMAs (HBM -> VMEM) for `block_idx` into slot
        # `buf_slot`.  Descriptor issue dominates for small rows, so unroll x8
        # to let the scheduler overlap SMEM index reads, descriptor setup and
        # the .start() calls.
        tok0 = block_idx * T

        @pl.loop(0, T // _UNROLL)
        def _(t8):
            t_base = t8 * _UNROLL
            for u in range(_UNROLL):                      # static unroll
                tok = idx_ref[tok0 + t_base + u]
                pltpu.make_async_copy(base_hbm.at[tok],
                                      base_buf.at[buf_slot, t_base + u],
                                      sem.at[buf_slot]).start()

    # Prime this split's first block (each split is self-contained, so the
    # outer grid axis can safely be "parallel").
    @pl.when(i == 0)
    def _():
        start_gather(blk, slot)

    # Cross-step prefetch: start block i+1's gather before computing block i.
    @pl.when(i + 1 < n_i)
    def _():
        start_gather(blk + 1, 1 - slot)

    # LoRA contraction on the MXU while this block's (already in flight,
    # typically already landed) gather DMAs complete.
    lora = jnp.dot(a_ref[...], b_ref[...], preferred_element_type=jnp.float32)

    # Single wait covering all T row copies of this block: per-row byte counts
    # on sem[slot] sum to exactly T * D * itemsize.
    pltpu.make_async_copy(base_hbm.at[pl.ds(0, T)], base_buf.at[slot],
                          sem.at[slot]).wait()

    # Add and store a dense (T, D) block (add in the storage dtype; avoids the
    # f32 widen+cast on bf16 tables, which matters most on v5e).
    base = base_buf[slot]
    out_ref[...] = (base + lora.astype(base.dtype)).astype(out_ref.dtype)


def _round_up(n, m):
    return -(-n // m) * m


def qlora_embedding(x, base_weight, lora_A, lora_B, *, scaling,
                    block_tokens=256):
    """x: int [B, S] -> [B, S, D] = base_weight[x] + (lora_A[x] @ lora_B) * scaling."""
    B, S = x.shape
    V, D = base_weight.shape
    _, r = lora_A.shape
    N = B * S

    itemsize = jnp.dtype(base_weight.dtype).itemsize
    # Dominant VMEM: 2-slot gather scratch + 2 pipelined output buffers, i.e.
    # ~4 * T * D * itemsize.  Keep that under ~24 MiB so the kernel fits v7x's
    # 64 MiB physical VMEM with headroom.
    max_t_vmem = max(8, (((24 << 20) // (4 * D * itemsize)) // 8) * 8)
    T = max(8, min(block_tokens, _round_up(N, 8), max_t_vmem))
    if V >= 8:
        # The single whole-block wait descriptor borrows a (T, D) HBM window,
        # so keep T <= V (true for any real vocabulary).
        T = min(T, (V // 8) * 8)

    n_blocks = -(-N // T)
    num_splits = 2 if n_blocks >= 2 else 1     # outer "parallel" axis (v7x TCs)
    bps = -(-n_blocks // num_splits)           # blocks per split
    N_pad = num_splits * bps * T

    # OOB-DMA guard: clamp indices (PyTorch nn.Embedding would raise instead).
    idx = jnp.clip(x.reshape(N).astype(jnp.int32), 0, V - 1)
    idx = jnp.pad(idx, (0, N_pad - N))         # padded tail gathers row 0, dropped later

    # lora_A gather hoisted to XLA: avoids a lane-padded (V, 128) VMEM-resident
    # table and T per-token sublane copies per step inside the kernel.
    a_gathered = jnp.take(lora_A, idx, axis=0)                    # (N_pad, r)
    # Fold the LoRA scaling into lora_B once (tiny r x D op, token-invariant).
    b_scaled = lora_B * jnp.asarray(scaling, dtype=lora_B.dtype)  # (r, D)

    grid_spec = pltpu.PrefetchScalarGridSpec(
        num_scalar_prefetch=1,
        grid=(num_splits, bps),
        in_specs=[
            pl.BlockSpec(memory_space=pl.ANY),                        # base table in HBM
            pl.BlockSpec((T, r), lambda c, i, idx: (c * bps + i, 0)), # gathered lora_A rows
            pl.BlockSpec((r, D), lambda c, i, idx: (0, 0)),           # pre-scaled lora_B
        ],
        out_specs=pl.BlockSpec((T, D), lambda c, i, idx: (c * bps + i, 0)),
        scratch_shapes=[
            pltpu.VMEM((2, T, D), base_weight.dtype),  # cross-step gather buffer
            pltpu.SemaphoreType.DMA((2,)),             # one DMA semaphore per slot
        ],
    )

    a_isize = jnp.dtype(lora_A.dtype).itemsize
    b_isize = jnp.dtype(lora_B.dtype).itemsize
    vmem_need = (4 * T * D * itemsize            # gather scratch + output buffers
                 + 2 * T * 128 * a_isize         # lora_A blocks (r lane-padded to 128)
                 + 2 * r * D * b_isize           # resident lora_B buffers
                 + (2 << 20))                    # slack
    vmem_limit = int(min(max(2 * vmem_need, 32 << 20), 60 << 20))

    out_flat = pl.pallas_call(
        functools.partial(_qlora_embed_kernel, block_tokens=T),
        out_shape=jax.ShapeDtypeStruct((N_pad, D), base_weight.dtype),
        grid_spec=grid_spec,
        compiler_params=pltpu.CompilerParams(
            dimension_semantics=("parallel", "arbitrary"),
            vmem_limit_bytes=vmem_limit),
    )(idx, base_weight, a_gathered, b_scaled)

    return out_flat[:N].reshape(B, S, D)


if __name__ == "__main__":
    # Small shapes consistent with the module's forward.
    num_embeddings = 64
    embedding_dim = 128
    rank = 8
    lora_alpha = 8
    use_rslora = True
    batch, seq = 2, 8

    scaling = (lora_alpha / rank ** 0.5) if use_rslora else (lora_alpha / rank)

    key = jax.random.PRNGKey(0)
    k_base, k_a, k_b, k_idx = jax.random.split(key, 4)

    # Deterministic synthetic parameters (module inits: base ~ N(0,1),
    # lora_A kaiming-uniform, lora_B zeros). lora_B is given small nonzero
    # values here so the LoRA matmul path is actually exercised.
    base_weight = jax.random.normal(k_base, (num_embeddings, embedding_dim),
                                    dtype=jnp.float32)
    bound = (3.0 ** 0.5) / (rank ** 0.5)  # kaiming_uniform-like bound
    lora_A = jax.random.uniform(k_a, (num_embeddings, rank),
                                minval=-bound, maxval=bound, dtype=jnp.float32)
    lora_B = 0.01 * jax.random.normal(k_b, (rank, embedding_dim),
                                      dtype=jnp.float32)

    x = jax.random.randint(k_idx, (batch, seq), 0, num_embeddings,
                           dtype=jnp.int32)

    out = qlora_embedding(x, base_weight, lora_A, lora_B, scaling=scaling)
    out = jax.block_until_ready(out)

    # Pure-JAX reference for sanity.
    ref = base_weight[x] + (lora_A[x] @ lora_B) * scaling
    assert out.shape == (batch, seq, embedding_dim)
    assert jnp.allclose(out, ref, atol=1e-5, rtol=1e-5), float(
        jnp.max(jnp.abs(out - ref)))

    print("KERNEL_OK")
</pallas_src>

<mosaic_0001>
module attributes {stable_mosaic.version = 11 : i64} {
  func.func @_qlora_embed_kernel(%arg0: i32, %arg1: i32, %arg2: memref<16xi32, #tpu.memory_space<smem>>, %arg3: memref<64x128xf32, #tpu.memory_space<any>>, %arg4: memref<16x8xf32, #tpu.memory_space<vmem>>, %arg5: memref<8x128xf32, #tpu.memory_space<vmem>>, %arg6: memref<16x128xf32, #tpu.memory_space<vmem>>, %arg7: memref<2x16x128xf32, #tpu.memory_space<vmem>>, %arg8: memref<2x!tpu.dma_semaphore, #tpu.memory_space<semaphore_mem>>) attributes {dimension_semantics = [#tpu.dimension_semantics<parallel>, #tpu.dimension_semantics<arbitrary>], iteration_bounds = array<i64: 1, 1>, scalar_prefetch = 1 : i64, scratch_operands = 2 : i64, tpu.core_type = #tpu.core_type<tc>, window_params = [{}, {transform_indices = @transform_1, window_bounds = array<i64: 16, 8>}, {pipeline_mode = #tpu.pipeline_mode<synchronous>, transform_indices = @transform_2, window_bounds = array<i64: 8, 128>}, {transform_indices = @transform_3, window_bounds = array<i64: 16, 128>}]} {
    %c1_i32 = arith.constant 1 : i32
    %0 = arith.muli %arg0, %c1_i32 : i32
    %1 = arith.addi %0, %arg1 : i32
    %c2_i32 = arith.constant 2 : i32
    %c0_i32 = arith.constant 0 : i32
    %2 = arith.cmpi eq, %c2_i32, %c0_i32 : i32
    %c1_i32_0 = arith.constant 1 : i32
    %3 = arith.select %2, %c1_i32_0, %c2_i32 : i32
    %4 = arith.remsi %arg1, %3 : i32
    %c0_i32_1 = arith.constant 0 : i32
    %5 = arith.cmpi ne, %4, %c0_i32_1 : i32
    %c0_i32_2 = arith.constant 0 : i32
    %6 = arith.cmpi slt, %4, %c0_i32_2 : i32
    %c0_i32_3 = arith.constant 0 : i32
    %7 = arith.cmpi slt, %3, %c0_i32_3 : i32
    %8 = arith.xori %6, %7 : i1
    %9 = arith.andi %8, %5 : i1
    %10 = arith.addi %4, %3 : i32
    %11 = arith.select %9, %10, %4 : i32
    %c0_i32_4 = arith.constant 0 : i32
    %12 = arith.cmpi eq, %arg1, %c0_i32_4 : i32
    %13 = arith.extui %12 : i1 to i32
    %c0_i32_5 = arith.constant 0 : i32
    %14 = arith.cmpi ne, %13, %c0_i32_5 : i32
    scf.if %14 {
      %c16_i32 = arith.constant 16 : i32
      %32 = arith.muli %1, %c16_i32 : i32
      %c0_i32_20 = arith.constant 0 : i32
      %c2_i32_21 = arith.constant 2 : i32
      %33 = arith.addi %c0_i32_20, %c2_i32_21 : i32
      %c1_i32_22 = arith.constant 1 : i32
      scf.for %arg9 = %c0_i32_20 to %33 step %c1_i32_22  : i32 {
        %c1_i32_24 = arith.constant 1 : i32
        %34 = arith.muli %arg9, %c1_i32_24 : i32
        %c0_i32_25 = arith.constant 0 : i32
        %35 = arith.addi %c0_i32_25, %34 : i32
        %c8_i32 = arith.constant 8 : i32
        %36 = arith.muli %35, %c8_i32 : i32
        %37 = arith.addi %32, %36 : i32
        %c0_i32_26 = arith.constant 0 : i32
        %38 = arith.addi %37, %c0_i32_26 : i32
        %39 = arith.index_cast %38 : i32 to index
        %40 = memref.load %arg2[%39] : memref<16xi32, #tpu.memory_space<smem>>
        %c0_i32_27 = arith.constant 0 : i32
        %41 = arith.addi %36, %c0_i32_27 : i32
        %c0_i32_28 = arith.constant 0 : i32
        %42 = tpu.memref_slice %arg3[%40, %c0_i32_28] : memref<64x128xf32, #tpu.memory_space<any>> -> memref<1x128xf32, #tpu.memory_space<any>>
        %43 = tpu.memref_squeeze %42 : memref<1x128xf32, #tpu.memory_space<any>> -> memref<128xf32, #tpu.memory_space<any>>
        %c0_i32_29 = arith.constant 0 : i32
        %44 = tpu.memref_slice %arg7[%11, %41, %c0_i32_29] : memref<2x16x128xf32, #tpu.memory_space<vmem>> -> memref<1x1x128xf32, #tpu.memory_space<vmem>>
        %45 = tpu.memref_squeeze %44 : memref<1x1x128xf32, #tpu.memory_space<vmem>> -> memref<128xf32, #tpu.memory_space<vmem>>
        %46 = tpu.memref_slice %arg8[%11] : memref<2x!tpu.dma_semaphore, #tpu.memory_space<semaphore_mem>> -> memref<1x!tpu.dma_semaphore, #tpu.memory_space<semaphore_mem>>
        %47 = tpu.memref_squeeze %46 : memref<1x!tpu.dma_semaphore, #tpu.memory_space<semaphore_mem>> -> memref<!tpu.dma_semaphore, #tpu.memory_space<semaphore_mem>>
        tpu.enqueue_dma source(%43 : memref<128xf32, #tpu.memory_space<any>>) target(%45 : memref<128xf32, #tpu.memory_space<vmem>>) target_semaphore(%47 : memref<!tpu.dma_semaphore, #tpu.memory_space<semaphore_mem>>)
        %48 = arith.addi %32, %36 : i32
        %c1_i32_30 = arith.constant 1 : i32
        %49 = arith.addi %48, %c1_i32_30 : i32
        %50 = arith.index_cast %49 : i32 to index
        %51 = memref.load %arg2[%50] : memref<16xi32, #tpu.memory_space<smem>>
        %c1_i32_31 = arith.constant 1 : i32
        %52 = arith.addi %36, %c1_i32_31 : i32
        %c0_i32_32 = arith.constant 0 : i32
        %53 = tpu.memref_slice %arg3[%51, %c0_i32_32] : memref<64x128xf32, #tpu.memory_space<any>> -> memref<1x128xf32, #tpu.memory_space<any>>
        %54 = tpu.memref_squeeze %53 : memref<1x128xf32, #tpu.memory_space<any>> -> memref<128xf32, #tpu.memory_space<any>>
        %c0_i32_33 = arith.constant 0 : i32
        %55 = tpu.memref_slice %arg7[%11, %52, %c0_i32_33] : memref<2x16x128xf32, #tpu.memory_space<vmem>> -> memref<1x1x128xf32, #tpu.memory_space<vmem>>
        %56 = tpu.memref_squeeze %55 : memref<1x1x128xf32, #tpu.memory_space<vmem>> -> memref<128xf32, #tpu.memory_space<vmem>>
        %57 = tpu.memref_slice %arg8[%11] : memref<2x!tpu.dma_semaphore, #tpu.memory_space<semaphore_mem>> -> memref<1x!tpu.dma_semaphore, #tpu.memory_space<semaphore_mem>>
        %58 = tpu.memref_squeeze %57 : memref<1x!tpu.dma_semaphore, #tpu.memory_space<semaphore_mem>> -> memref<!tpu.dma_semaphore, #tpu.memory_space<semaphore_mem>>
        tpu.enqueue_dma source(%54 : memref<128xf32, #tpu.memory_space<any>>) target(%56 : memref<128xf32, #tpu.memory_space<vmem>>) target_semaphore(%58 : memref<!tpu.dma_semaphore, #tpu.memory_space<semaphore_mem>>)
        %59 = arith.addi %32, %36 : i32
        %c2_i32_34 = arith.constant 2 : i32
        %60 = arith.addi %59, %c2_i32_34 : i32
        %61 = arith.index_cast %60 : i32 to index
        %62 = memref.load %arg2[%61] : memref<16xi32, #tpu.memory_space<smem>>
        %c2_i32_35 = arith.constant 2 : i32
        %63 = arith.addi %36, %c2_i32_35 : i32
        %c0_i32_36 = arith.constant 0 : i32
        %64 = tpu.memref_slice %arg3[%62, %c0_i32_36] : memref<64x128xf32, #tpu.memory_space<any>> -> memref<1x128xf32, #tpu.memory_space<any>>
        %65 = tpu.memref_squeeze %64 : memref<1x128xf32, #tpu.memory_space<any>> -> memref<128xf32, #tpu.memory_space<any>>
        %c0_i32_37 = arith.constant 0 : i32
        %66 = tpu.memref_slice %arg7[%11, %63, %c0_i32_37] : memref<2x16x128xf32, #tpu.memory_space<vmem>> -> memref<1x1x128xf32, #tpu.memory_space<vmem>>
        %67 = tpu.memref_squeeze %66 : memref<1x1x128xf32, #tpu.memory_space<vmem>> -> memref<128xf32, #tpu.memory_space<vmem>>
        %68 = tpu.memref_slice %arg8[%11] : memref<2x!tpu.dma_semaphore, #tpu.memory_space<semaphore_mem>> -> memref<1x!tpu.dma_semaphore, #tpu.memory_space<semaphore_mem>>
        %69 = tpu.memref_squeeze %68 : memref<1x!tpu.dma_semaphore, #tpu.memory_space<semaphore_mem>> -> memref<!tpu.dma_semaphore, #tpu.memory_space<semaphore_mem>>
        tpu.enqueue_dma source(%65 : memref<128xf32, #tpu.memory_space<any>>) target(%67 : memref<128xf32, #tpu.memory_space<vmem>>) target_semaphore(%69 : memref<!tpu.dma_semaphore, #tpu.memory_space<semaphore_mem>>)
        %70 = arith.addi %32, %36 : i32
        %c3_i32 = arith.constant 3 : i32
        %71 = arith.addi %70, %c3_i32 : i32
        %72 = arith.index_cast %71 : i32 to index
        %73 = memref.load %arg2[%72] : memref<16xi32, #tpu.memory_space<smem>>
        %c3_i32_38 = arith.constant 3 : i32
        %74 = arith.addi %36, %c3_i32_38 : i32
        %c0_i32_39 = arith.constant 0 : i32
        %75 = tpu.memref_slice %arg3[%73, %c0_i32_39] : memref<64x128xf32, #tpu.memory_space<any>> -> memref<1x128xf32, #tpu.memory_space<any>>
        %76 = tpu.memref_squeeze %75 : memref<1x128xf32, #tpu.memory_space<any>> -> memref<128xf32, #tpu.memory_space<any>>
        %c0_i32_40 = arith.constant 0 : i32
        %77 = tpu.memref_slice %arg7[%11, %74, %c0_i32_40] : memref<2x16x128xf32, #tpu.memory_space<vmem>> -> memref<1x1x128xf32, #tpu.memory_space<vmem>>
        %78 = tpu.memref_squeeze %77 : memref<1x1x128xf32, #tpu.memory_space<vmem>> -> memref<128xf32, #tpu.memory_space<vmem>>
        %79 = tpu.memref_slice %arg8[%11] : memref<2x!tpu.dma_semaphore, #tpu.memory_space<semaphore_mem>> -> memref<1x!tpu.dma_semaphore, #tpu.memory_space<semaphore_mem>>
        %80 = tpu.memref_squeeze %79 : memref<1x!tpu.dma_semaphore, #tpu.memory_space<semaphore_mem>> -> memref<!tpu.dma_semaphore, #tpu.memory_space<semaphore_mem>>
        tpu.enqueue_dma source(%76 : memref<128xf32, #tpu.memory_space<any>>) target(%78 : memref<128xf32, #tpu.memory_space<vmem>>) target_semaphore(%80 : memref<!tpu.dma_semaphore, #tpu.memory_space<semaphore_mem>>)
        %81 = arith.addi %32, %36 : i32
        %c4_i32 = arith.constant 4 : i32
        %82 = arith.addi %81, %c4_i32 : i32
        %83 = arith.index_cast %82 : i32 to index
        %84 = memref.load %arg2[%83] : memref<16xi32, #tpu.memory_space<smem>>
        %c4_i32_41 = arith.constant 4 : i32
        %85 = arith.addi %36, %c4_i32_41 : i32
        %c0_i32_42 = arith.constant 0 : i32
        %86 = tpu.memref_slice %arg3[%84, %c0_i32_42] : memref<64x128xf32, #tpu.memory_space<any>> -> memref<1x128xf32, #tpu.memory_space<any>>
        %87 = tpu.memref_squeeze %86 : memref<1x128xf32, #tpu.memory_space<any>> -> memref<128xf32, #tpu.memory_space<any>>
        %c0_i32_43 = arith.constant 0 : i32
        %88 = tpu.memref_slice %arg7[%11, %85, %c0_i32_43] : memref<2x16x128xf32, #tpu.memory_space<vmem>> -> memref<1x1x128xf32, #tpu.memory_space<vmem>>
        %89 = tpu.memref_squeeze %88 : memref<1x1x128xf32, #tpu.memory_space<vmem>> -> memref<128xf32, #tpu.memory_space<vmem>>
        %90 = tpu.memref_slice %arg8[%11] : memref<2x!tpu.dma_semaphore, #tpu.memory_space<semaphore_mem>> -> memref<1x!tpu.dma_semaphore, #tpu.memory_space<semaphore_mem>>
        %91 = tpu.memref_squeeze %90 : memref<1x!tpu.dma_semaphore, #tpu.memory_space<semaphore_mem>> -> memref<!tpu.dma_semaphore, #tpu.memory_space<semaphore_mem>>
        tpu.enqueue_dma source(%87 : memref<128xf32, #tpu.memory_space<any>>) target(%89 : memref<128xf32, #tpu.memory_space<vmem>>) target_semaphore(%91 : memref<!tpu.dma_semaphore, #tpu.memory_space<semaphore_mem>>)
        %92 = arith.addi %32, %36 : i32
        %c5_i32 = arith.constant 5 : i32
        %93 = arith.addi %92, %c5_i32 : i32
        %94 = arith.index_cast %93 : i32 to index
        %95 = memref.load %arg2[%94] : memref<16xi32, #tpu.memory_space<smem>>
        %c5_i32_44 = arith.constant 5 : i32
        %96 = arith.addi %36, %c5_i32_44 : i32
        %c0_i32_45 = arith.constant 0 : i32
        %97 = tpu.memref_slice %arg3[%95, %c0_i32_45] : memref<64x128xf32, #tpu.memory_space<any>> -> memref<1x128xf32, #tpu.memory_space<any>>
        %98 = tpu.memref_squeeze %97 : memref<1x128xf32, #tpu.memory_space<any>> -> memref<128xf32, #tpu.memory_space<any>>
        %c0_i32_46 = arith.constant 0 : i32
        %99 = tpu.memref_slice %arg7[%11, %96, %c0_i32_46] : memref<2x16x128xf32, #tpu.memory_space<vmem>> -> memref<1x1x128xf32, #tpu.memory_space<vmem>>
        %100 = tpu.memref_squeeze %99 : memref<1x1x128xf32, #tpu.memory_space<vmem>> -> memref<128xf32, #tpu.memory_space<vmem>>
        %101 = tpu.memref_slice %arg8[%11] : memref<2x!tpu.dma_semaphore, #tpu.memory_space<semaphore_mem>> -> memref<1x!tpu.dma_semaphore, #tpu.memory_space<semaphore_mem>>
        %102 = tpu.memref_squeeze %101 : memref<1x!tpu.dma_semaphore, #tpu.memory_space<semaphore_mem>> -> memref<!tpu.dma_semaphore, #tpu.memory_space<semaphore_mem>>
        tpu.enqueue_dma source(%98 : memref<128xf32, #tpu.memory_space<any>>) target(%100 : memref<128xf32, #tpu.memory_space<vmem>>) target_semaphore(%102 : memref<!tpu.dma_semaphore, #tpu.memory_space<semaphore_mem>>)
        %103 = arith.addi %32, %36 : i32
        %c6_i32 = arith.constant 6 : i32
        %104 = arith.addi %103, %c6_i32 : i32
        %105 = arith.index_cast %104 : i32 to index
        %106 = memref.load %arg2[%105] : memref<16xi32, #tpu.memory_space<smem>>
        %c6_i32_47 = arith.constant 6 : i32
        %107 = arith.addi %36, %c6_i32_47 : i32
        %c0_i32_48 = arith.constant 0 : i32
        %108 = tpu.memref_slice %arg3[%106, %c0_i32_48] : memref<64x128xf32, #tpu.memory_space<any>> -> memref<1x128xf32, #tpu.memory_space<any>>
        %109 = tpu.memref_squeeze %108 : memref<1x128xf32, #tpu.memory_space<any>> -> memref<128xf32, #tpu.memory_space<any>>
        %c0_i32_49 = arith.constant 0 : i32
        %110 = tpu.memref_slice %arg7[%11, %107, %c0_i32_49] : memref<2x16x128xf32, #tpu.memory_space<vmem>> -> memref<1x1x128xf32, #tpu.memory_space<vmem>>
        %111 = tpu.memref_squeeze %110 : memref<1x1x128xf32, #tpu.memory_space<vmem>> -> memref<128xf32, #tpu.memory_space<vmem>>
        %112 = tpu.memref_slice %arg8[%11] : memref<2x!tpu.dma_semaphore, #tpu.memory_space<semaphore_mem>> -> memref<1x!tpu.dma_semaphore, #tpu.memory_space<semaphore_mem>>
        %113 = tpu.memref_squeeze %112 : memref<1x!tpu.dma_semaphore, #tpu.memory_space<semaphore_mem>> -> memref<!tpu.dma_semaphore, #tpu.memory_space<semaphore_mem>>
        tpu.enqueue_dma source(%109 : memref<128xf32, #tpu.memory_space<any>>) target(%111 : memref<128xf32, #tpu.memory_space<vmem>>) target_semaphore(%113 : memref<!tpu.dma_semaphore, #tpu.memory_space<semaphore_mem>>)
        %114 = arith.addi %32, %36 : i32
        %c7_i32 = arith.constant 7 : i32
        %115 = arith.addi %114, %c7_i32 : i32
        %116 = arith.index_cast %115 : i32 to index
        %117 = memref.load %arg2[%116] : memref<16xi32, #tpu.memory_space<smem>>
        %c7_i32_50 = arith.constant 7 : i32
        %118 = arith.addi %36, %c7_i32_50 : i32
        %c0_i32_51 = arith.constant 0 : i32
        %119 = tpu.memref_slice %arg3[%117, %c0_i32_51] : memref<64x128xf32, #tpu.memory_space<any>> -> memref<1x128xf32, #tpu.memory_space<any>>
        %120 = tpu.memref_squeeze %119 : memref<1x128xf32, #tpu.memory_space<any>> -> memref<128xf32, #tpu.memory_space<any>>
        %c0_i32_52 = arith.constant 0 : i32
        %121 = tpu.memref_slice %arg7[%11, %118, %c0_i32_52] : memref<2x16x128xf32, #tpu.memory_space<vmem>> -> memref<1x1x128xf32, #tpu.memory_space<vmem>>
        %122 = tpu.memref_squeeze %121 : memref<1x1x128xf32, #tpu.memory_space<vmem>> -> memref<128xf32, #tpu.memory_space<vmem>>
        %123 = tpu.memref_slice %arg8[%11] : memref<2x!tpu.dma_semaphore, #tpu.memory_space<semaphore_mem>> -> memref<1x!tpu.dma_semaphore, #tpu.memory_space<semaphore_mem>>
        %124 = tpu.memref_squeeze %123 : memref<1x!tpu.dma_semaphore, #tpu.memory_space<semaphore_mem>> -> memref<!tpu.dma_semaphore, #tpu.memory_space<semaphore_mem>>
        tpu.enqueue_dma source(%120 : memref<128xf32, #tpu.memory_space<any>>) target(%122 : memref<128xf32, #tpu.memory_space<vmem>>) target_semaphore(%124 : memref<!tpu.dma_semaphore, #tpu.memory_space<semaphore_mem>>)
      }
      %c2_i32_23 = arith.constant 2 : i32
    } else {
    }
    %c1_i32_6 = arith.constant 1 : i32
    %15 = arith.addi %arg1, %c1_i32_6 : i32
    %c1_i32_7 = arith.constant 1 : i32
    %16 = arith.cmpi slt, %15, %c1_i32_7 : i32
    %17 = arith.extui %16 : i1 to i32
    %c0_i32_8 = arith.constant 0 : i32
    %18 = arith.cmpi ne, %17, %c0_i32_8 : i32
    scf.if %18 {
      %c1_i32_20 = arith.constant 1 : i32
      %32 = arith.addi %1, %c1_i32_20 : i32
      %c1_i32_21 = arith.constant 1 : i32
      %33 = arith.subi %c1_i32_21, %11 : i32
      %c16_i32 = arith.constant 16 : i32
      %34 = arith.muli %32, %c16_i32 : i32
      %c0_i32_22 = arith.constant 0 : i32
      %c2_i32_23 = arith.constant 2 : i32
      %35 = arith.addi %c0_i32_22, %c2_i32_23 : i32
      %c1_i32_24 = arith.constant 1 : i32
      scf.for %arg9 = %c0_i32_22 to %35 step %c1_i32_24  : i32 {
        %c1_i32_26 = arith.constant 1 : i32
        %36 = arith.muli %arg9, %c1_i32_26 : i32
        %c0_i32_27 = arith.constant 0 : i32
        %37 = arith.addi %c0_i32_27, %36 : i32
        %c8_i32 = arith.constant 8 : i32
        %38 = arith.muli %37, %c8_i32 : i32
        %39 = arith.addi %34, %38 : i32
        %c0_i32_28 = arith.constant 0 : i32
        %40 = arith.addi %39, %c0_i32_28 : i32
        %41 = arith.index_cast %40 : i32 to index
        %42 = memref.load %arg2[%41] : memref<16xi32, #tpu.memory_space<smem>>
        %c0_i32_29 = arith.constant 0 : i32
        %43 = arith.addi %38, %c0_i32_29 : i32
        %c0_i32_30 = arith.constant 0 : i32
        %44 = tpu.memref_slice %arg3[%42, %c0_i32_30] : memref<64x128xf32, #tpu.memory_space<any>> -> memref<1x128xf32, #tpu.memory_space<any>>
        %45 = tpu.memref_squeeze %44 : memref<1x128xf32, #tpu.memory_space<any>> -> memref<128xf32, #tpu.memory_space<any>>
        %c0_i32_31 = arith.constant 0 : i32
        %46 = tpu.memref_slice %arg7[%33, %43, %c0_i32_31] : memref<2x16x128xf32, #tpu.memory_space<vmem>> -> memref<1x1x128xf32, #tpu.memory_space<vmem>>
        %47 = tpu.memref_squeeze %46 : memref<1x1x128xf32, #tpu.memory_space<vmem>> -> memref<128xf32, #tpu.memory_space<vmem>>
        %48 = tpu.memref_slice %arg8[%33] : memref<2x!tpu.dma_semaphore, #tpu.memory_space<semaphore_mem>> -> memref<1x!tpu.dma_semaphore, #tpu.memory_space<semaphore_mem>>
        %49 = tpu.memref_squeeze %48 : memref<1x!tpu.dma_semaphore, #tpu.memory_space<semaphore_mem>> -> memref<!tpu.dma_semaphore, #tpu.memory_space<semaphore_mem>>
        tpu.enqueue_dma source(%45 : memref<128xf32, #tpu.memory_space<any>>) target(%47 : memref<128xf32, #tpu.memory_space<vmem>>) target_semaphore(%49 : memref<!tpu.dma_semaphore, #tpu.memory_space<semaphore_mem>>)
        %50 = arith.addi %34, %38 : i32
        %c1_i32_32 = arith.constant 1 : i32
        %51 = arith.addi %50, %c1_i32_32 : i32
        %52 = arith.index_cast %51 : i32 to index
        %53 = memref.load %arg2[%52] : memref<16xi32, #tpu.memory_space<smem>>
        %c1_i32_33 = arith.constant 1 : i32
        %54 = arith.addi %38, %c1_i32_33 : i32
        %c0_i32_34 = arith.constant 0 : i32
        %55 = tpu.memref_slice %arg3[%53, %c0_i32_34] : memref<64x128xf32, #tpu.memory_space<any>> -> memref<1x128xf32, #tpu.memory_space<any>>
        %56 = tpu.memref_squeeze %55 : memref<1x128xf32, #tpu.memory_space<any>> -> memref<128xf32, #tpu.memory_space<any>>
        %c0_i32_35 = arith.constant 0 : i32
        %57 = tpu.memref_slice %arg7[%33, %54, %c0_i32_35] : memref<2x16x128xf32, #tpu.memory_space<vmem>> -> memref<1x1x128xf32, #tpu.memory_space<vmem>>
        %58 = tpu.memref_squeeze %57 : memref<1x1x128xf32, #tpu.memory_space<vmem>> -> memref<128xf32, #tpu.memory_space<vmem>>
        %59 = tpu.memref_slice %arg8[%33] : memref<2x!tpu.dma_semaphore, #tpu.memory_space<semaphore_mem>> -> memref<1x!tpu.dma_semaphore, #tpu.memory_space<semaphore_mem>>
        %60 = tpu.memref_squeeze %59 : memref<1x!tpu.dma_semaphore, #tpu.memory_space<semaphore_mem>> -> memref<!tpu.dma_semaphore, #tpu.memory_space<semaphore_mem>>
        tpu.enqueue_dma source(%56 : memref<128xf32, #tpu.memory_space<any>>) target(%58 : memref<128xf32, #tpu.memory_space<vmem>>) target_semaphore(%60 : memref<!tpu.dma_semaphore, #tpu.memory_space<semaphore_mem>>)
        %61 = arith.addi %34, %38 : i32
        %c2_i32_36 = arith.constant 2 : i32
        %62 = arith.addi %61, %c2_i32_36 : i32
        %63 = arith.index_cast %62 : i32 to index
        %64 = memref.load %arg2[%63] : memref<16xi32, #tpu.memory_space<smem>>
        %c2_i32_37 = arith.constant 2 : i32
        %65 = arith.addi %38, %c2_i32_37 : i32
        %c0_i32_38 = arith.constant 0 : i32
        %66 = tpu.memref_slice %arg3[%64, %c0_i32_38] : memref<64x128xf32, #tpu.memory_space<any>> -> memref<1x128xf32, #tpu.memory_space<any>>
        %67 = tpu.memref_squeeze %66 : memref<1x128xf32, #tpu.memory_space<any>> -> memref<128xf32, #tpu.memory_space<any>>
        %c0_i32_39 = arith.constant 0 : i32
        %68 = tpu.memref_slice %arg7[%33, %65, %c0_i32_39] : memref<2x16x128xf32, #tpu.memory_space<vmem>> -> memref<1x1x128xf32, #tpu.memory_space<vmem>>
        %69 = tpu.memref_squeeze %68 : memref<1x1x128xf32, #tpu.memory_space<vmem>> -> memref<128xf32, #tpu.memory_space<vmem>>
        %70 = tpu.memref_slice %arg8[%33] : memref<2x!tpu.dma_semaphore, #tpu.memory_space<semaphore_mem>> -> memref<1x!tpu.dma_semaphore, #tpu.memory_space<semaphore_mem>>
        %71 = tpu.memref_squeeze %70 : memref<1x!tpu.dma_semaphore, #tpu.memory_space<semaphore_mem>> -> memref<!tpu.dma_semaphore, #tpu.memory_space<semaphore_mem>>
        tpu.enqueue_dma source(%67 : memref<128xf32, #tpu.memory_space<any>>) target(%69 : memref<128xf32, #tpu.memory_space<vmem>>) target_semaphore(%71 : memref<!tpu.dma_semaphore, #tpu.memory_space<semaphore_mem>>)
        %72 = arith.addi %34, %38 : i32
        %c3_i32 = arith.constant 3 : i32
        %73 = arith.addi %72, %c3_i32 : i32
        %74 = arith.index_cast %73 : i32 to index
        %75 = memref.load %arg2[%74] : memref<16xi32, #tpu.memory_space<smem>>
        %c3_i32_40 = arith.constant 3 : i32
        %76 = arith.addi %38, %c3_i32_40 : i32
        %c0_i32_41 = arith.constant 0 : i32
        %77 = tpu.memref_slice %arg3[%75, %c0_i32_41] : memref<64x128xf32, #tpu.memory_space<any>> -> memref<1x128xf32, #tpu.memory_space<any>>
        %78 = tpu.memref_squeeze %77 : memref<1x128xf32, #tpu.memory_space<any>> -> memref<128xf32, #tpu.memory_space<any>>
        %c0_i32_42 = arith.constant 0 : i32
        %79 = tpu.memref_slice %arg7[%33, %76, %c0_i32_42] : memref<2x16x128xf32, #tpu.memory_space<vmem>> -> memref<1x1x128xf32, #tpu.memory_space<vmem>>
        %80 = tpu.memref_squeeze %79 : memref<1x1x128xf32, #tpu.memory_space<vmem>> -> memref<128xf32, #tpu.memory_space<vmem>>
        %81 = tpu.memref_slice %arg8[%33] : memref<2x!tpu.dma_semaphore, #tpu.memory_space<semaphore_mem>> -> memref<1x!tpu.dma_semaphore, #tpu.memory_space<semaphore_mem>>
        %82 = tpu.memref_squeeze %81 : memref<1x!tpu.dma_semaphore, #tpu.memory_space<semaphore_mem>> -> memref<!tpu.dma_semaphore, #tpu.memory_space<semaphore_mem>>
        tpu.enqueue_dma source(%78 : memref<128xf32, #tpu.memory_space<any>>) target(%80 : memref<128xf32, #tpu.memory_space<vmem>>) target_semaphore(%82 : memref<!tpu.dma_semaphore, #tpu.memory_space<semaphore_mem>>)
        %83 = arith.addi %34, %38 : i32
        %c4_i32 = arith.constant 4 : i32
        %84 = arith.addi %83, %c4_i32 : i32
        %85 = arith.index_cast %84 : i32 to index
        %86 = memref.load %arg2[%85] : memref<16xi32, #tpu.memory_space<smem>>
        %c4_i32_43 = arith.constant 4 : i32
        %87 = arith.addi %38, %c4_i32_43 : i32
        %c0_i32_44 = arith.constant 0 : i32
        %88 = tpu.memref_slice %arg3[%86, %c0_i32_44] : memref<64x128xf32, #tpu.memory_space<any>> -> memref<1x128xf32, #tpu.memory_space<any>>
        %89 = tpu.memref_squeeze %88 : memref<1x128xf32, #tpu.memory_space<any>> -> memref<128xf32, #tpu.memory_space<any>>
        %c0_i32_45 = arith.constant 0 : i32
        %90 = tpu.memref_slice %arg7[%33, %87, %c0_i32_45] : memref<2x16x128xf32, #tpu.memory_space<vmem>> -> memref<1x1x128xf32, #tpu.memory_space<vmem>>
        %91 = tpu.memref_squeeze %90 : memref<1x1x128xf32, #tpu.memory_space<vmem>> -> memref<128xf32, #tpu.memory_space<vmem>>
        %92 = tpu.memref_slice %arg8[%33] : memref<2x!tpu.dma_semaphore, #tpu.memory_space<semaphore_mem>> -> memref<1x!tpu.dma_semaphore, #tpu.memory_space<semaphore_mem>>
        %93 = tpu.memref_squeeze %92 : memref<1x!tpu.dma_semaphore, #tpu.memory_space<semaphore_mem>> -> memref<!tpu.dma_semaphore, #tpu.memory_space<semaphore_mem>>
        tpu.enqueue_dma source(%89 : memref<128xf32, #tpu.memory_space<any>>) target(%91 : memref<128xf32, #tpu.memory_space<vmem>>) target_semaphore(%93 : memref<!tpu.dma_semaphore, #tpu.memory_space<semaphore_mem>>)
        %94 = arith.addi %34, %38 : i32
        %c5_i32 = arith.constant 5 : i32
        %95 = arith.addi %94, %c5_i32 : i32
        %96 = arith.index_cast %95 : i32 to index
        %97 = memref.load %arg2[%96] : memref<16xi32, #tpu.memory_space<smem>>
        %c5_i32_46 = arith.constant 5 : i32
        %98 = arith.addi %38, %c5_i32_46 : i32
        %c0_i32_47 = arith.constant 0 : i32
        %99 = tpu.memref_slice %arg3[%97, %c0_i32_47] : memref<64x128xf32, #tpu.memory_space<any>> -> memref<1x128xf32, #tpu.memory_space<any>>
        %100 = tpu.memref_squeeze %99 : memref<1x128xf32, #tpu.memory_space<any>> -> memref<128xf32, #tpu.memory_space<any>>
        %c0_i32_48 = arith.constant 0 : i32
        %101 = tpu.memref_slice %arg7[%33, %98, %c0_i32_48] : memref<2x16x128xf32, #tpu.memory_space<vmem>> -> memref<1x1x128xf32, #tpu.memory_space<vmem>>
        %102 = tpu.memref_squeeze %101 : memref<1x1x128xf32, #tpu.memory_space<vmem>> -> memref<128xf32, #tpu.memory_space<vmem>>
        %103 = tpu.memref_slice %arg8[%33] : memref<2x!tpu.dma_semaphore, #tpu.memory_space<semaphore_mem>> -> memref<1x!tpu.dma_semaphore, #tpu.memory_space<semaphore_mem>>
        %104 = tpu.memref_squeeze %103 : memref<1x!tpu.dma_semaphore, #tpu.memory_space<semaphore_mem>> -> memref<!tpu.dma_semaphore, #tpu.memory_space<semaphore_mem>>
        tpu.enqueue_dma source(%100 : memref<128xf32, #tpu.memory_space<any>>) target(%102 : memref<128xf32, #tpu.memory_space<vmem>>) target_semaphore(%104 : memref<!tpu.dma_semaphore, #tpu.memory_space<semaphore_mem>>)
        %105 = arith.addi %34, %38 : i32
        %c6_i32 = arith.constant 6 : i32
        %106 = arith.addi %105, %c6_i32 : i32
        %107 = arith.index_cast %106 : i32 to index
        %108 = memref.load %arg2[%107] : memref<16xi32, #tpu.memory_space<smem>>
        %c6_i32_49 = arith.constant 6 : i32
        %109 = arith.addi %38, %c6_i32_49 : i32
        %c0_i32_50 = arith.constant 0 : i32
        %110 = tpu.memref_slice %arg3[%108, %c0_i32_50] : memref<64x128xf32, #tpu.memory_space<any>> -> memref<1x128xf32, #tpu.memory_space<any>>
        %111 = tpu.memref_squeeze %110 : memref<1x128xf32, #tpu.memory_space<any>> -> memref<128xf32, #tpu.memory_space<any>>
        %c0_i32_51 = arith.constant 0 : i32
        %112 = tpu.memref_slice %arg7[%33, %109, %c0_i32_51] : memref<2x16x128xf32, #tpu.memory_space<vmem>> -> memref<1x1x128xf32, #tpu.memory_space<vmem>>
        %113 = tpu.memref_squeeze %112 : memref<1x1x128xf32, #tpu.memory_space<vmem>> -> memref<128xf32, #tpu.memory_space<vmem>>
        %114 = tpu.memref_slice %arg8[%33] : memref<2x!tpu.dma_semaphore, #tpu.memory_space<semaphore_mem>> -> memref<1x!tpu.dma_semaphore, #tpu.memory_space<semaphore_mem>>
        %115 = tpu.memref_squeeze %114 : memref<1x!tpu.dma_semaphore, #tpu.memory_space<semaphore_mem>> -> memref<!tpu.dma_semaphore, #tpu.memory_space<semaphore_mem>>
        tpu.enqueue_dma source(%111 : memref<128xf32, #tpu.memory_space<any>>) target(%113 : memref<128xf32, #tpu.memory_space<vmem>>) target_semaphore(%115 : memref<!tpu.dma_semaphore, #tpu.memory_space<semaphore_mem>>)
        %116 = arith.addi %34, %38 : i32
        %c7_i32 = arith.constant 7 : i32
        %117 = arith.addi %116, %c7_i32 : i32
        %118 = arith.index_cast %117 : i32 to index
        %119 = memref.load %arg2[%118] : memref<16xi32, #tpu.memory_space<smem>>
        %c7_i32_52 = arith.constant 7 : i32
        %120 = arith.addi %38, %c7_i32_52 : i32
        %c0_i32_53 = arith.constant 0 : i32
        %121 = tpu.memref_slice %arg3[%119, %c0_i32_53] : memref<64x128xf32, #tpu.memory_space<any>> -> memref<1x128xf32, #tpu.memory_space<any>>
        %122 = tpu.memref_squeeze %121 : memref<1x128xf32, #tpu.memory_space<any>> -> memref<128xf32, #tpu.memory_space<any>>
        %c0_i32_54 = arith.constant 0 : i32
        %123 = tpu.memref_slice %arg7[%33, %120, %c0_i32_54] : memref<2x16x128xf32, #tpu.memory_space<vmem>> -> memref<1x1x128xf32, #tpu.memory_space<vmem>>
        %124 = tpu.memref_squeeze %123 : memref<1x1x128xf32, #tpu.memory_space<vmem>> -> memref<128xf32, #tpu.memory_space<vmem>>
        %125 = tpu.memref_slice %arg8[%33] : memref<2x!tpu.dma_semaphore, #tpu.memory_space<semaphore_mem>> -> memref<1x!tpu.dma_semaphore, #tpu.memory_space<semaphore_mem>>
        %126 = tpu.memref_squeeze %125 : memref<1x!tpu.dma_semaphore, #tpu.memory_space<semaphore_mem>> -> memref<!tpu.dma_semaphore, #tpu.memory_space<semaphore_mem>>
        tpu.enqueue_dma source(%122 : memref<128xf32, #tpu.memory_space<any>>) target(%124 : memref<128xf32, #tpu.memory_space<vmem>>) target_semaphore(%126 : memref<!tpu.dma_semaphore, #tpu.memory_space<semaphore_mem>>)
      }
      %c2_i32_25 = arith.constant 2 : i32
    } else {
    }
    %c0 = arith.constant 0 : index
    %c0_9 = arith.constant 0 : index
    %19 = vector.load %arg4[%c0, %c0_9] : memref<16x8xf32, #tpu.memory_space<vmem>>, vector<16x8xf32>
    %c0_10 = arith.constant 0 : index
    %c0_11 = arith.constant 0 : index
    %20 = vector.load %arg5[%c0_10, %c0_11] : memref<8x128xf32, #tpu.memory_space<vmem>>, vector<8x128xf32>
    %cst = arith.constant dense<0.000000e+00> : vector<16x128xf32>
    %21 = tpu.matmul %19, %20, %cst {dimension_numbers = #tpu.dot_dimension_numbers<[1], [0], [0], [1], [0, 0, 1, 1], [], []>} : vector<16x8xf32>, vector<8x128xf32>, vector<16x128xf32> -> vector<16x128xf32>
    %c0_i32_12 = arith.constant 0 : i32
    %c0_i32_13 = arith.constant 0 : i32
    %22 = tpu.memref_slice %arg3[%c0_i32_12, %c0_i32_13] : memref<64x128xf32, #tpu.memory_space<any>> -> memref<16x128xf32, #tpu.memory_space<any>>
    %c0_i32_14 = arith.constant 0 : i32
    %c0_i32_15 = arith.constant 0 : i32
    %23 = tpu.memref_slice %arg7[%11, %c0_i32_14, %c0_i32_15] : memref<2x16x128xf32, #tpu.memory_space<vmem>> -> memref<1x16x128xf32, #tpu.memory_space<vmem>>
    %24 = tpu.memref_squeeze %23 : memref<1x16x128xf32, #tpu.memory_space<vmem>> -> memref<16x128xf32, #tpu.memory_space<vmem>>
    %25 = tpu.memref_slice %arg8[%11] : memref<2x!tpu.dma_semaphore, #tpu.memory_space<semaphore_mem>> -> memref<1x!tpu.dma_semaphore, #tpu.memory_space<semaphore_mem>>
    %26 = tpu.memref_squeeze %25 : memref<1x!tpu.dma_semaphore, #tpu.memory_space<semaphore_mem>> -> memref<!tpu.dma_semaphore, #tpu.memory_space<semaphore_mem>>
    tpu.wait_dma2 semaphore(%26 : memref<!tpu.dma_semaphore, #tpu.memory_space<semaphore_mem>>) src(%22 : memref<16x128xf32, #tpu.memory_space<any>>) dst(%24 : memref<16x128xf32, #tpu.memory_space<vmem>>)
    %27 = arith.index_cast %11 : i32 to index
    %c0_16 = arith.constant 0 : index
    %c0_17 = arith.constant 0 : index
    %28 = vector.load %arg7[%27, %c0_16, %c0_17] : memref<2x16x128xf32, #tpu.memory_space<vmem>>, vector<1x16x128xf32>
    %29 = vector.shape_cast %28 : vector<1x16x128xf32> to vector<16x128xf32>
    %30 = arith.addf %29, %21 : vector<16x128xf32>
    %c0_18 = arith.constant 0 : index
    %c0_19 = arith.constant 0 : index
    %31 = vector.load %arg6[%c0_18, %c0_19] : memref<16x128xf32, #tpu.memory_space<vmem>>, vector<16x128xf32>
    tpu.vector_store %arg6[%c0_18, %c0_19], %30 {strides = array<i32>} : memref<16x128xf32, #tpu.memory_space<vmem>>, vector<16x128xf32>,
    return
  }
  func.func @transform_1(%arg0: i32, %arg1: i32, %arg2: memref<16xi32, #tpu.memory_space<smem>>) -> (i32, i32) {
    %c1_i32 = arith.constant 1 : i32
    %0 = arith.muli %arg0, %c1_i32 : i32
    %1 = arith.addi %0, %arg1 : i32
    %c0_i32 = arith.constant 0 : i32
    %c0_i32_0 = arith.constant 0 : i32
    return %1, %c0_i32 : i32, i32
  }
  func.func @transform_2(%arg0: i32, %arg1: i32, %arg2: memref<16xi32, #tpu.memory_space<smem>>) -> (i32, i32) {
    %c0_i32 = arith.constant 0 : i32
    %c0_i32_0 = arith.constant 0 : i32
    %c0_i32_1 = arith.constant 0 : i32
    return %c0_i32, %c0_i32_0 : i32, i32
  }
  func.func @transform_3(%arg0: i32, %arg1: i32, %arg2: memref<16xi32, #tpu.memory_space<smem>>) -> (i32, i32) {
    %c1_i32 = arith.constant 1 : i32
    %0 = arith.muli %arg0, %c1_i32 : i32
    %1 = arith.addi %0, %arg1 : i32
    %c0_i32 = arith.constant 0 : i32
    %c0_i32_0 = arith.constant 0 : i32
    return %1, %c0_i32 : i32, i32
  }
}

</mosaic_0001>

<llo_original>
// kernel: tpu_custom_call.1
$region0: #{tpu_custom_call.1}
  #allocation0 [shape = 'u32[]', space=smem, size = 0x4, offset = 0x4, fixed_abs, tag = 'smem constant byte address 0x4 - core index']
  #allocation1 [shape = 'u32[144,128]{1,0:T(1,128)}', space=vmem, size = 0x12000, scoped, tag = 'internal scratch']
  #allocation2 [shape = 'f32[2,16,128]{2,1,0:T(8,128)}', space=vmem, size = 0x4000, scoped, tag = 'scratch operand']
  #allocation3 [shape = 's32[2]{0}', space=sflag, size = 0x8, scoped, tag = 'scratch operand']
  #allocation4 [shape = 's32[1]{0}', space=sflag, size = 0x4, scoped, tag = 'scoped memory for tpu_custom_call.1']
  #allocation5 [shape = 'u8[512]{0}', space=smem, size = 0x200, scoped, tag = 'prefetched SMEM operand 0']
  #allocation8 [shape = 's32[]', space=sflag, size = 0x4, offset = 0, fixed_abs, tag = 'sflag constant byte address 0x0 - dummy sync flag']
  #allocation9 [shape = 's32[]', space=sflag, size = 0x4, offset = 0, fixed_abs, tag = 'sflag constant byte address 0x0 - dummy sync flag']
  #allocation10 [shape = 'u32[]', space=smem, size = 0x4, offset = 0x44, fixed_abs, tag = 'smem constant byte address 0x44 - assertion arg 0']
  #allocation11 [shape = 'u32[]', space=smem, size = 0x4, offset = 0x48, fixed_abs, tag = 'smem constant byte address 0x48 - assertion arg 1']
  #allocation12 [shape = 's32[]', space=sflag, size = 0x4, offset = 0, fixed_abs, tag = 'sflag constant byte address 0x0 - dummy sync flag']
  #allocation13 [shape = 's32[]', space=sflag, size = 0x4, offset = 0, fixed_abs, tag = 'sflag constant byte address 0x0 - dummy sync flag']
  #allocation14 [shape = 's32[]', space=sflag, size = 0x4, offset = 0, fixed_abs, tag = 'sflag constant byte address 0x0 - dummy sync flag']
  #allocation15 [shape = 's32[]', space=sflag, size = 0x4, offset = 0, fixed_abs, tag = 'sflag constant byte address 0x0 - dummy sync flag']
  #allocation16 [shape = 's32[]', space=sflag, size = 0x4, offset = 0, fixed_abs, tag = 'sflag constant byte address 0x0 - dummy sync flag']
  #allocation17 [shape = 's32[]', space=sflag, size = 0x4, offset = 0, fixed_abs, tag = 'sflag constant byte address 0x0 - dummy sync flag']
  #allocation18 [shape = 's32[]', space=sflag, size = 0x4, offset = 0, fixed_abs, tag = 'sflag constant byte address 0x0 - dummy sync flag']
  #allocation19 [shape = 's32[]', space=sflag, size = 0x4, offset = 0, fixed_abs, tag = 'sflag constant byte address 0x0 - dummy sync flag']
  #allocation20 [shape = 's32[]', space=sflag, size = 0x4, offset = 0, fixed_abs, tag = 'sflag constant byte address 0x0 - dummy sync flag']
  #allocation21 [shape = 's32[]', space=sflag, size = 0x4, offset = 0, fixed_abs, tag = 'sflag constant byte address 0x0 - dummy sync flag']
  #allocation22 [shape = 's32[]', space=sflag, size = 0x4, offset = 0, fixed_abs, tag = 'sflag constant byte address 0x0 - dummy sync flag']
  #allocation23 [shape = 's32[]', space=sflag, size = 0x4, offset = 0, fixed_abs, tag = 'sflag constant byte address 0x0 - dummy sync flag']
  #allocation24 [shape = 's32[]', space=sflag, size = 0x4, offset = 0, fixed_abs, tag = 'sflag constant byte address 0x0 - dummy sync flag']
  #allocation25 [shape = 's32[]', space=sflag, size = 0x4, offset = 0, fixed_abs, tag = 'sflag constant byte address 0x0 - dummy sync flag']
  #allocation26 [shape = 's32[]', space=sflag, size = 0x4, offset = 0, fixed_abs, tag = 'sflag constant byte address 0x0 - dummy sync flag']
  #allocation27 [shape = 's32[]', space=sflag, size = 0x4, offset = 0, fixed_abs, tag = 'sflag constant byte address 0x0 - dummy sync flag']
  #allocation28 [shape = 's32[]', space=sflag, size = 0x4, offset = 0, fixed_abs, tag = 'sflag constant byte address 0x0 - dummy sync flag']
  #allocation29 [shape = 's32[]', space=sflag, size = 0x4, offset = 0, fixed_abs, tag = 'sflag constant byte address 0x0 - dummy sync flag']
  #allocation30 [shape = 's32[]', space=sflag, size = 0x4, offset = 0, fixed_abs, tag = 'sflag constant byte address 0x0 - dummy sync flag']
  #allocation31 [shape = 's32[]', space=sflag, size = 0x4, offset = 0, fixed_abs, tag = 'sflag constant byte address 0x0 - dummy sync flag']
  #allocation32 [shape = 's32[]', space=sflag, size = 0x4, offset = 0, fixed_abs, tag = 'sflag constant byte address 0x0 - dummy sync flag']
  #allocation33 [shape = 's32[]', space=sflag, size = 0x4, offset = 0, fixed_abs, tag = 'sflag constant byte address 0x0 - dummy sync flag']
  #allocation34 [shape = 's32[]', space=sflag, size = 0x4, offset = 0, fixed_abs, tag = 'sflag constant byte address 0x0 - dummy sync flag']
  #allocation35 [shape = 's32[]', space=sflag, size = 0x4, offset = 0, fixed_abs, tag = 'sflag constant byte address 0x0 - dummy sync flag']
  #allocation36 [shape = 's32[]', space=sflag, size = 0x4, offset = 0, fixed_abs, tag = 'sflag constant byte address 0x0 - dummy sync flag']
  #allocation37 [shape = 's32[]', space=sflag, size = 0x4, offset = 0, fixed_abs, tag = 'sflag constant byte address 0x0 - dummy sync flag']
  #allocation38 [shape = 's32[]', space=sflag, size = 0x4, offset = 0, fixed_abs, tag = 'sflag constant byte address 0x0 - dummy sync flag']
  #allocation39 [shape = 's32[]', space=sflag, size = 0x4, offset = 0, fixed_abs, tag = 'sflag constant byte address 0x0 - dummy sync flag']
  #allocation40 [shape = 's32[]', space=sflag, size = 0x4, offset = 0, fixed_abs, tag = 'sflag constant byte address 0x0 - dummy sync flag']
  #allocation41 [shape = 's32[]', space=sflag, size = 0x4, offset = 0, fixed_abs, tag = 'sflag constant byte address 0x0 - dummy sync flag']
  %s0 = inlined_call_operand.vmem [shape: s32[16], index: 0, kind: input, shape index: {}]
  %s1 = inlined_call_operand.hbm [shape: f32[64,128], index: 1, kind: input, shape index: {}]
  %s2 = inlined_call_operand.vmem [shape: f32[16,8], index: 2, kind: input, shape index: {}]
  %s3 = inlined_call_operand.vmem [shape: f32[8,128], index: 3, kind: input, shape index: {}]
  %s4 = inlined_call_operand.hbm [shape: f32[16,128], index: 4, kind: output, shape index: {}]
  %s5 = sld [smem:[#allocation0]]
  $region104: #{tpu_custom_call.1} parent=0
    _
  %s7 = ssub.s32 1, %s5
  %s8 = scalar_select 0, %s7, %s5
  %s9 = sshll.u32 %s0, 4
  %s10 = int_to_ptr.vmem [resolvable:$true] %s9
  %12 = dma.vmem_to_smem %s10, 16, [#allocation5], [#allocation4]
  %13 = dma.done [#allocation4], 16
  %14 = sfence
  $region1: #{tpu_custom_call.1} parent=0
    #allocation6 [shape = 'u8[8192]{0}', space=vmem, size = 0x2000, scoped, tag = 'output window, operand 0, single buffered']
    #allocation7 [shape = 's32[1]{0}', space=sflag, size = 0x4, scoped, tag = 'scoped memory for tpu_custom_call.1']
    %15 = vsyncpa [#allocation7], 0
    // Predicated region
    $region2: #{tpu_custom_call.1} parent=1 // pred_check
      _
    $region3: #{tpu_custom_call.1} parent=1 // pred_check_branch
      %17 = sbr.rel (0) target = $region5
    $region4: #{tpu_custom_call.1} parent=1 // pred_region
      %s18 = sadd.s32 0, 0
      %s19 = smul.u32 2, %s18
      %p20 = scmp.lt.s32.totalorder %s19, 1
      %s21 = scalar_select %p20, %s19, 1
      %s22 = smul.addr %s21, 8
      %s23 = scalar_lea.vmem %s2, %s22
      %s24 = sadd.s32 0, 0
      %s25 = smul.u32 2, %s24
    $region5: #{tpu_custom_call.1} parent=1 // pred_fallthru
      _
    // Predicated region
    $region6: #{tpu_custom_call.1} parent=1 // pred_check
      _
    $region7: #{tpu_custom_call.1} parent=1 // pred_check_branch
      %27 = sbr.rel (0) target = $region9
    $region8: #{tpu_custom_call.1} parent=1 // pred_region
      _
    $region9: #{tpu_custom_call.1} parent=1 // pred_fallthru
      _
    %s28 = sadd.s32 0, 0
    %s29 = smul.u32 2, %s28
    %p30 = scmp.lt.s32.totalorder %s29, 1
    %s31 = scalar_select %p30, %s29, 1
    %s32 = smul.addr %s31, 8
    %s33 = scalar_lea.vmem %s2, %s32
    %s34 = sadd.s32 0, 0
    %s35 = smul.u32 2, %s34
    %p36 = scmp.lt.s32.totalorder %s35, 1
    %s37 = scalar_select %p36, %s35, 1
    %s38 = smul.addr %s37, 8
    %s39 = scalar_lea.vmem %s2, %s38
    %s40 = sadd.s32 0, 0
    %s41 = smul.u32 2, %s40
    %s42 = sadd.s32 0, 0
    %s43 = smul.u32 2, %s42
    %s44 = sadd.s32 0, 0
    %s45 = ssub.s32 0, 0
    %s46 = ssub.s32 0, 0
    %p47 = scmp.ne.s32.totalorder 0, 0
    %p48 = scmp.lt.s32.totalorder 0, 0
    %p49 = pnand %p48, %p47
    %p50 = pneg %p49
    %s51 = sadd.s32 0, 2
    %s52 = scalar_select %p50, %s51, 0
    %p53 = scmp.eq.s32.totalorder 0, 0
    // Predicated region
    $region10: #{tpu_custom_call.1} parent=1 // pred_check
      %p54 = pneg %p53
    $region11: #{tpu_custom_call.1} parent=1 // pred_check_branch
      %56 = sbr.rel (%p54) target = $region13
    $region12: #{tpu_custom_call.1} parent=1 // pred_region
      %s57 = smul.u32 %s44, 16
      loop: start=0, step=1, limit=2
      $region14: #{tpu_custom_call.1} parent=12 // loop_pre_header
        _
      $region15: #{tpu_custom_call.1} parent=12 // loop_header
        %s59 = sphi 0, %s63
        %p60 = scmp.ge.s32.totalorder %s59, 2
      $region16: #{tpu_custom_call.1} parent=12 // loop_header_branch
        %62 = sbr.rel (%p60) target = $region20
      $region17: #{tpu_custom_call.1} parent=12 // loop_body
        %s64 = smul.u32 %s59, 8
        %s65 = sadd.s32 %s57, %s64
        %s66 = sld [smem:[#allocation5 + %s65]]
        %s67 = smul.addr %s66, 16
        %s68 = scalar_lea.hbm %s1, %s67
        %s69 = smul.u32 %s52, 16
        %s70 = sadd.s32 %s64, %s69
        %s71 = scalar_lea.vmem [#allocation2], %s70
        %s72 = scalar_lea.sflag [#allocation3], %s52
        // Predicated region
        $region21: #{tpu_custom_call.1} parent=17 // pred_check
          _
        $region22: #{tpu_custom_call.1} parent=17 // pred_check_branch
          %74 = sbr.rel target = $region24
        $region23: #{tpu_custom_call.1} parent=17 // pred_region
          %75 = sst [smem:[#allocation10]] [#allocation9]
          %76 = sst [smem:[#allocation11]] [#allocation8]
        $region24: #{tpu_custom_call.1} parent=17 // pred_fallthru
          _
        %78 = shalt.err (0)
        %s80 = sshll.u32 %s71, 4
        %s81 = int_to_ptr.vmem [resolvable:$true] %s80
        %83 = dma.hbm_to_vmem [thread:$0]  %s68, 16, %s81, %s72
        %s84 = sadd.s32 %s65, 1
        %s85 = sld [smem:[#allocation5 + %s84]]
        %s86 = sadd.s32 %s64, 1
        %s87 = smul.addr %s85, 16
        %s88 = scalar_lea.hbm %s1, %s87
        %s89 = sadd.s32 %s86, %s69
        %s90 = scalar_lea.vmem [#allocation2], %s89
        // Predicated region
        $region25: #{tpu_custom_call.1} parent=17 // pred_check
          _
        $region26: #{tpu_custom_call.1} parent=17 // pred_check_branch
          %92 = sbr.rel target = $region28
        $region27: #{tpu_custom_call.1} parent=17 // pred_region
          %93 = sst [smem:[#allocation10]] [#allocation13]
          %94 = sst [smem:[#allocation11]] [#allocation12]
        $region28: #{tpu_custom_call.1} parent=17 // pred_fallthru
          _
        %96 = shalt.err (0)
        %s98 = sshll.u32 %s90, 4
        %s99 = int_to_ptr.vmem [resolvable:$true] %s98
        %101 = dma.hbm_to_vmem [thread:$0]  %s88, 16, %s99, %s72
        %s102 = sadd.s32 %s65, 2
        %s103 = sld [smem:[#allocation5 + %s102]]
        %s104 = sadd.s32 %s64, 2
        %s105 = smul.addr %s103, 16
        %s106 = scalar_lea.hbm %s1, %s105
        %s107 = sadd.s32 %s104, %s69
        %s108 = scalar_lea.vmem [#allocation2], %s107
        // Predicated region
        $region29: #{tpu_custom_call.1} parent=17 // pred_check
          _
        $region30: #{tpu_custom_call.1} parent=17 // pred_check_branch
          %110 = sbr.rel target = $region32
        $region31: #{tpu_custom_call.1} parent=17 // pred_region
          %111 = sst [smem:[#allocation10]] [#allocation15]
          %112 = sst [smem:[#allocation11]] [#allocation14]
        $region32: #{tpu_custom_call.1} parent=17 // pred_fallthru
          _
        %114 = shalt.err (0)
        %s116 = sshll.u32 %s108, 4
        %s117 = int_to_ptr.vmem [resolvable:$true] %s116
        %119 = dma.hbm_to_vmem [thread:$0]  %s106, 16, %s117, %s72
        %s120 = sadd.s32 %s65, 3
        %s121 = sld [smem:[#allocation5 + %s120]]
        %s122 = sadd.s32 %s64, 3
        %s123 = smul.addr %s121, 16
        %s124 = scalar_lea.hbm %s1, %s123
        %s125 = sadd.s32 %s122, %s69
        %s126 = scalar_lea.vmem [#allocation2], %s125
        // Predicated region
        $region33: #{tpu_custom_call.1} parent=17 // pred_check
          _
        $region34: #{tpu_custom_call.1} parent=17 // pred_check_branch
          %128 = sbr.rel target = $region36
        $region35: #{tpu_custom_call.1} parent=17 // pred_region
          %129 = sst [smem:[#allocation10]] [#allocation17]
          %130 = sst [smem:[#allocation11]] [#allocation16]
        $region36: #{tpu_custom_call.1} parent=17 // pred_fallthru
          _
        %132 = shalt.err (0)
        %s134 = sshll.u32 %s126, 4
        %s135 = int_to_ptr.vmem [resolvable:$true] %s134
        %137 = dma.hbm_to_vmem [thread:$0]  %s124, 16, %s135, %s72
        %s138 = sadd.s32 %s65, 4
        %s139 = sld [smem:[#allocation5 + %s138]]
        %s140 = sadd.s32 %s64, 4
        %s141 = smul.addr %s139, 16
        %s142 = scalar_lea.hbm %s1, %s141
        %s143 = sadd.s32 %s140, %s69
        %s144 = scalar_lea.vmem [#allocation2], %s143
        // Predicated region
        $region37: #{tpu_custom_call.1} parent=17 // pred_check
          _
        $region38: #{tpu_custom_call.1} parent=17 // pred_check_branch
          %146 = sbr.rel target = $region40
        $region39: #{tpu_custom_call.1} parent=17 // pred_region
          %147 = sst [smem:[#allocation10]] [#allocation19]
          %148 = sst [smem:[#allocation11]] [#allocation18]
        $region40: #{tpu_custom_call.1} parent=17 // pred_fallthru
          _
        %150 = shalt.err (0)
        %s152 = sshll.u32 %s144, 4
        %s153 = int_to_ptr.vmem [resolvable:$true] %s152
        %155 = dma.hbm_to_vmem [thread:$0]  %s142, 16, %s153, %s72
        %s156 = sadd.s32 %s65, 5
        %s157 = sld [smem:[#allocation5 + %s156]]
        %s158 = sadd.s32 %s64, 5
        %s159 = smul.addr %s157, 16
        %s160 = scalar_lea.hbm %s1, %s159
        %s161 = sadd.s32 %s158, %s69
        %s162 = scalar_lea.vmem [#allocation2], %s161
        // Predicated region
        $region41: #{tpu_custom_call.1} parent=17 // pred_check
          _
        $region42: #{tpu_custom_call.1} parent=17 // pred_check_branch
          %164 = sbr.rel target = $region44
        $region43: #{tpu_custom_call.1} parent=17 // pred_region
          %165 = sst [smem:[#allocation10]] [#allocation21]
          %166 = sst [smem:[#allocation11]] [#allocation20]
        $region44: #{tpu_custom_call.1} parent=17 // pred_fallthru
          _
        %168 = shalt.err (0)
        %s170 = sshll.u32 %s162, 4
        %s171 = int_to_ptr.vmem [resolvable:$true] %s170
        %173 = dma.hbm_to_vmem [thread:$0]  %s160, 16, %s171, %s72
        %s174 = sadd.s32 %s65, 6
        %s175 = sld [smem:[#allocation5 + %s174]]
        %s176 = sadd.s32 %s64, 6
        %s177 = smul.addr %s175, 16
        %s178 = scalar_lea.hbm %s1, %s177
        %s179 = sadd.s32 %s176, %s69
        %s180 = scalar_lea.vmem [#allocation2], %s179
        // Predicated region
        $region45: #{tpu_custom_call.1} parent=17 // pred_check
          _
        $region46: #{tpu_custom_call.1} parent=17 // pred_check_branch
          %182 = sbr.rel target = $region48
        $region47: #{tpu_custom_call.1} parent=17 // pred_region
          %183 = sst [smem:[#allocation10]] [#allocation23]
          %184 = sst [smem:[#allocation11]] [#allocation22]
        $region48: #{tpu_custom_call.1} parent=17 // pred_fallthru
          _
        %186 = shalt.err (0)
        %s188 = sshll.u32 %s180, 4
        %s189 = int_to_ptr.vmem [resolvable:$true] %s188
        %191 = dma.hbm_to_vmem [thread:$0]  %s178, 16, %s189, %s72
        %s192 = sadd.s32 %s65, 7
        %s193 = sld [smem:[#allocation5 + %s192]]
        %s194 = sadd.s32 %s64, 7
        %s195 = smul.addr %s193, 16
        %s196 = scalar_lea.hbm %s1, %s195
        %s197 = sadd.s32 %s194, %s69
        %s198 = scalar_lea.vmem [#allocation2], %s197
        // Predicated region
        $region49: #{tpu_custom_call.1} parent=17 // pred_check
          _
        $region50: #{tpu_custom_call.1} parent=17 // pred_check_branch
          %200 = sbr.rel target = $region52
        $region51: #{tpu_custom_call.1} parent=17 // pred_region
          %201 = sst [smem:[#allocation10]] [#allocation25]
          %202 = sst [smem:[#allocation11]] [#allocation24]
        $region52: #{tpu_custom_call.1} parent=17 // pred_fallthru
          _
        %204 = shalt.err (0)
        %s206 = sshll.u32 %s198, 4
        %s207 = int_to_ptr.vmem [resolvable:$true] %s206
        %209 = dma.hbm_to_vmem [thread:$0]  %s196, 16, %s207, %s72
      $region18: #{tpu_custom_call.1} parent=12 // loop_footer
        %s63 = sadd.s32 1, %s59
      $region19: #{tpu_custom_call.1} parent=12 // loop_footer_branch
        %58 = sbr.rel target = $region15
      $region20: #{tpu_custom_call.1} parent=12 // loop_exit
        _
    $region13: #{tpu_custom_call.1} parent=1 // pred_fallthru
      _
    %s210 = sadd.s32 0, 1
    %p211 = scmp.lt.s32.totalorder %s210, 1
    // Predicated region
    $region53: #{tpu_custom_call.1} parent=1 // pred_check
      %p212 = pneg %p211
    $region54: #{tpu_custom_call.1} parent=1 // pred_check_branch
      %214 = sbr.rel (%p212) target = $region56
    $region55: #{tpu_custom_call.1} parent=1 // pred_region
      %s215 = sadd.s32 %s44, 1
      %s216 = ssub.s32 1, %s52
      %s217 = smul.u32 %s215, 16
      loop: start=0, step=1, limit=2
      $region57: #{tpu_custom_call.1} parent=55 // loop_pre_header
        _
      $region58: #{tpu_custom_call.1} parent=55 // loop_header
        %s219 = sphi 0, %s223
        %p220 = scmp.ge.s32.totalorder %s219, 2
      $region59: #{tpu_custom_call.1} parent=55 // loop_header_branch
        %222 = sbr.rel (%p220) target = $region63
      $region60: #{tpu_custom_call.1} parent=55 // loop_body
        %s224 = smul.u32 %s219, 8
        %s225 = sadd.s32 %s217, %s224
        %s226 = sld [smem:[#allocation5 + %s225]]
        %s227 = smul.addr %s226, 16
        %s228 = scalar_lea.hbm %s1, %s227
        %s229 = smul.u32 %s216, 16
        %s230 = sadd.s32 %s224, %s229
        %s231 = scalar_lea.vmem [#allocation2], %s230
        %s232 = scalar_lea.sflag [#allocation3], %s216
        // Predicated region
        $region64: #{tpu_custom_call.1} parent=60 // pred_check
          _
        $region65: #{tpu_custom_call.1} parent=60 // pred_check_branch
          %234 = sbr.rel target = $region67
        $region66: #{tpu_custom_call.1} parent=60 // pred_region
          %235 = sst [smem:[#allocation10]] [#allocation27]
          %236 = sst [smem:[#allocation11]] [#allocation26]
        $region67: #{tpu_custom_call.1} parent=60 // pred_fallthru
          _
        %238 = shalt.err (0)
        %s240 = sshll.u32 %s231, 4
        %s241 = int_to_ptr.vmem [resolvable:$true] %s240
        %243 = dma.hbm_to_vmem [thread:$0]  %s228, 16, %s241, %s232
        %s244 = sadd.s32 %s225, 1
        %s245 = sld [smem:[#allocation5 + %s244]]
        %s246 = sadd.s32 %s224, 1
        %s247 = smul.addr %s245, 16
        %s248 = scalar_lea.hbm %s1, %s247
        %s249 = sadd.s32 %s246, %s229
        %s250 = scalar_lea.vmem [#allocation2], %s249
        // Predicated region
        $region68: #{tpu_custom_call.1} parent=60 // pred_check
          _
        $region69: #{tpu_custom_call.1} parent=60 // pred_check_branch
          %252 = sbr.rel target = $region71
        $region70: #{tpu_custom_call.1} parent=60 // pred_region
          %253 = sst [smem:[#allocation10]] [#allocation29]
          %254 = sst [smem:[#allocation11]] [#allocation28]
        $region71: #{tpu_custom_call.1} parent=60 // pred_fallthru
          _
        %256 = shalt.err (0)
        %s258 = sshll.u32 %s250, 4
        %s259 = int_to_ptr.vmem [resolvable:$true] %s258
        %261 = dma.hbm_to_vmem [thread:$0]  %s248, 16, %s259, %s232
        %s262 = sadd.s32 %s225, 2
        %s263 = sld [smem:[#allocation5 + %s262]]
        %s264 = sadd.s32 %s224, 2
        %s265 = smul.addr %s263, 16
        %s266 = scalar_lea.hbm %s1, %s265
        %s267 = sadd.s32 %s264, %s229
        %s268 = scalar_lea.vmem [#allocation2], %s267
        // Predicated region
        $region72: #{tpu_custom_call.1} parent=60 // pred_check
          _
        $region73: #{tpu_custom_call.1} parent=60 // pred_check_branch
          %270 = sbr.rel target = $region75
        $region74: #{tpu_custom_call.1} parent=60 // pred_region
          %271 = sst [smem:[#allocation10]] [#allocation31]
          %272 = sst [smem:[#allocation11]] [#allocation30]
        $region75: #{tpu_custom_call.1} parent=60 // pred_fallthru
          _
        %274 = shalt.err (0)
        %s276 = sshll.u32 %s268, 4
        %s277 = int_to_ptr.vmem [resolvable:$true] %s276
        %279 = dma.hbm_to_vmem [thread:$0]  %s266, 16, %s277, %s232
        %s280 = sadd.s32 %s225, 3
        %s281 = sld [smem:[#allocation5 + %s280]]
        %s282 = sadd.s32 %s224, 3
        %s283 = smul.addr %s281, 16
        %s284 = scalar_lea.hbm %s1, %s283
        %s285 = sadd.s32 %s282, %s229
        %s286 = scalar_lea.vmem [#allocation2], %s285
        // Predicated region
        $region76: #{tpu_custom_call.1} parent=60 // pred_check
          _
        $region77: #{tpu_custom_call.1} parent=60 // pred_check_branch
          %288 = sbr.rel target = $region79
        $region78: #{tpu_custom_call.1} parent=60 // pred_region
          %289 = sst [smem:[#allocation10]] [#allocation33]
          %290 = sst [smem:[#allocation11]] [#allocation32]
        $region79: #{tpu_custom_call.1} parent=60 // pred_fallthru
          _
        %292 = shalt.err (0)
        %s294 = sshll.u32 %s286, 4
        %s295 = int_to_ptr.vmem [resolvable:$true] %s294
        %297 = dma.hbm_to_vmem [thread:$0]  %s284, 16, %s295, %s232
        %s298 = sadd.s32 %s225, 4
        %s299 = sld [smem:[#allocation5 + %s298]]
        %s300 = sadd.s32 %s224, 4
        %s301 = smul.addr %s299, 16
        %s302 = scalar_lea.hbm %s1, %s301
        %s303 = sadd.s32 %s300, %s229
        %s304 = scalar_lea.vmem [#allocation2], %s303
        // Predicated region
        $region80: #{tpu_custom_call.1} parent=60 // pred_check
          _
        $region81: #{tpu_custom_call.1} parent=60 // pred_check_branch
          %306 = sbr.rel target = $region83
        $region82: #{tpu_custom_call.1} parent=60 // pred_region
          %307 = sst [smem:[#allocation10]] [#allocation35]
          %308 = sst [smem:[#allocation11]] [#allocation34]
        $region83: #{tpu_custom_call.1} parent=60 // pred_fallthru
          _
        %310 = shalt.err (0)
        %s312 = sshll.u32 %s304, 4
        %s313 = int_to_ptr.vmem [resolvable:$true] %s312
        %315 = dma.hbm_to_vmem [thread:$0]  %s302, 16, %s313, %s232
        %s316 = sadd.s32 %s225, 5
        %s317 = sld [smem:[#allocation5 + %s316]]
        %s318 = sadd.s32 %s224, 5
        %s319 = smul.addr %s317, 16
        %s320 = scalar_lea.hbm %s1, %s319
        %s321 = sadd.s32 %s318, %s229
        %s322 = scalar_lea.vmem [#allocation2], %s321
        // Predicated region
        $region84: #{tpu_custom_call.1} parent=60 // pred_check
          _
        $region85: #{tpu_custom_call.1} parent=60 // pred_check_branch
          %324 = sbr.rel target = $region87
        $region86: #{tpu_custom_call.1} parent=60 // pred_region
          %325 = sst [smem:[#allocation10]] [#allocation37]
          %326 = sst [smem:[#allocation11]] [#allocation36]
        $region87: #{tpu_custom_call.1} parent=60 // pred_fallthru
          _
        %328 = shalt.err (0)
        %s330 = sshll.u32 %s322, 4
        %s331 = int_to_ptr.vmem [resolvable:$true] %s330
        %333 = dma.hbm_to_vmem [thread:$0]  %s320, 16, %s331, %s232
        %s334 = sadd.s32 %s225, 6
        %s335 = sld [smem:[#allocation5 + %s334]]
        %s336 = sadd.s32 %s224, 6
        %s337 = smul.addr %s335, 16
        %s338 = scalar_lea.hbm %s1, %s337
        %s339 = sadd.s32 %s336, %s229
        %s340 = scalar_lea.vmem [#allocation2], %s339
        // Predicated region
        $region88: #{tpu_custom_call.1} parent=60 // pred_check
          _
        $region89: #{tpu_custom_call.1} parent=60 // pred_check_branch
          %342 = sbr.rel target = $region91
        $region90: #{tpu_custom_call.1} parent=60 // pred_region
          %343 = sst [smem:[#allocation10]] [#allocation39]
          %344 = sst [smem:[#allocation11]] [#allocation38]
        $region91: #{tpu_custom_call.1} parent=60 // pred_fallthru
          _
        %346 = shalt.err (0)
        %s348 = sshll.u32 %s340, 4
        %s349 = int_to_ptr.vmem [resolvable:$true] %s348
        %351 = dma.hbm_to_vmem [thread:$0]  %s338, 16, %s349, %s232
        %s352 = sadd.s32 %s225, 7
        %s353 = sld [smem:[#allocation5 + %s352]]
        %s354 = sadd.s32 %s224, 7
        %s355 = smul.addr %s353, 16
        %s356 = scalar_lea.hbm %s1, %s355
        %s357 = sadd.s32 %s354, %s229
        %s358 = scalar_lea.vmem [#allocation2], %s357
        // Predicated region
        $region92: #{tpu_custom_call.1} parent=60 // pred_check
          _
        $region93: #{tpu_custom_call.1} parent=60 // pred_check_branch
          %360 = sbr.rel target = $region95
        $region94: #{tpu_custom_call.1} parent=60 // pred_region
          %361 = sst [smem:[#allocation10]] [#allocation41]
          %362 = sst [smem:[#allocation11]] [#allocation40]
        $region95: #{tpu_custom_call.1} parent=60 // pred_fallthru
          _
        %364 = shalt.err (0)
        %s366 = sshll.u32 %s358, 4
        %s367 = int_to_ptr.vmem [resolvable:$true] %s366
        %369 = dma.hbm_to_vmem [thread:$0]  %s356, 16, %s367, %s232
      $region61: #{tpu_custom_call.1} parent=55 // loop_footer
        %s223 = sadd.s32 1, %s219
      $region62: #{tpu_custom_call.1} parent=55 // loop_footer_branch
        %218 = sbr.rel target = $region58
      $region63: #{tpu_custom_call.1} parent=55 // loop_exit
        _
    $region56: #{tpu_custom_call.1} parent=1 // pred_fallthru
      _
    %v370 = vld [vmem:[%s39] sm:$0xff]
    %v371 = vld [vmem:[%s39 + $0x8] sm:$0xff]
    %v372 = vld [vmem:[%s3] sm:$0xff]
    %vm373 = vcmask 64512
    %v375 = vsel %vm373, %v370, 0
    %v378 = vsel %vm373, %v371, 0
    %380 = vmatprep.subr.mxu0 0.0
    %381 = vmatpush1.msra.mxu0 %v372
    %382 = vmatprep.subr.mxu0 0.0
    %383 = vmatpush1.msra.mxu0 0.0
    %384 = vmatprep.subr.mxu0 0.0
    %385 = vmatpush1.msra.mxu0 0.0
    %386 = vmatprep.subr.mxu0 0.0
    %387 = vmatpush1.msra.mxu0 0.0
    %388 = vmatprep.subr.mxu0 0.0
    %389 = vmatpush1.msra.mxu0 0.0
    %390 = vmatprep.subr.mxu0 0.0
    %391 = vmatpush1.msra.mxu0 0.0
    %392 = vmatprep.subr.mxu0 0.0
    %393 = vmatpush1.msra.mxu0 0.0
    %394 = vmatprep.subr.mxu0 0.0
    %395 = vmatpush1.msra.mxu0 0.0
    %396 = vmatprep.subr.mxu0 0.0
    %397 = vmatpush1.msra.mxu0 0.0
    %398 = vmatprep.subr.mxu0 0.0
    %399 = vmatpush1.msra.mxu0 0.0
    %400 = vmatprep.subr.mxu0 0.0
    %401 = vmatpush1.msra.mxu0 0.0
    %402 = vmatprep.subr.mxu0 0.0
    %403 = vmatpush1.msra.mxu0 0.0
    %404 = vmatprep.subr.mxu0 0.0
    %405 = vmatpush1.msra.mxu0 0.0
    %406 = vmatprep.subr.mxu0 0.0
    %407 = vmatpush1.msra.mxu0 0.0
    %408 = vmatprep.subr.mxu0 0.0
    %409 = vmatpush1.msra.mxu0 0.0
    %410 = vmatprep.subr.mxu0 0.0
    %411 = vmatpush1.msra.mxu0 0.0
    %412 = vmatprep.subr.mxu0 0.0
    %413 = vmatpush1.msra.mxu0 0.0
    %414 = vmatprep.subr.mxu0 0.0
    %415 = vmatpush1.msra.mxu0 0.0
    %416 = vmatprep.subr.mxu0 0.0
    %417 = vmatpush1.msra.mxu0 0.0
    %418 = vmatprep.subr.mxu0 0.0
    %419 = vmatpush1.msra.mxu0 0.0
    %420 = vmatprep.subr.mxu0 0.0
    %421 = vmatpush1.msra.mxu0 0.0
    %422 = vmatprep.subr.mxu0 0.0
    %423 = vmatpush1.msra.mxu0 0.0
    %424 = vmatprep.subr.mxu0 0.0
    %425 = vmatpush1.msra.mxu0 0.0
    %426 = vmatprep.subr.mxu0 0.0
    %427 = vmatpush1.msra.mxu0 0.0
    %428 = vmatprep.subr.mxu0 0.0
    %429 = vmatpush1.msra.mxu0 0.0
    %430 = vmatprep.subr.mxu0 0.0
    %431 = vmatpush1.msra.mxu0 0.0
    %432 = vmatprep.subr.mxu0 0.0
    %433 = vmatpush1.msra.mxu0 0.0
    %434 = vmatprep.subr.mxu0 0.0
    %435 = vmatpush1.msra.mxu0 0.0
    %436 = vmatprep.subr.mxu0 0.0
    %437 = vmatpush1.msra.mxu0 0.0
    %438 = vmatprep.subr.mxu0 0.0
    %439 = vmatpush1.msra.mxu0 0.0
    %440 = vmatprep.subr.mxu0 0.0
    %441 = vmatpush1.msra.mxu0 0.0
    %442 = vmatprep.subr.mxu0 0.0
    %443 = vmatpush1.msra.mxu0 0.0
    %444 = vmatprep.mubr.f32.mxu0 0.0
    %445 = vmatmul.mubr.f32.gmra.mrb[0].mxu0 %v375
    %v446 = vpop.f32.mrb[0].mxu0
    %v447 = vadd.f32 0.0, %v446
    %v448 = vpop.f32.mrb[0].mxu0
    %449 = vmatprep.mubr.f32.mxu0 0.0
    %450 = vmatmul.mubr.f32.gmra.mrb[0].mxu0 %v378
    %v451 = vpop.f32.mrb[0].mxu0
    %v452 = vadd.f32 0.0, %v451
    %v453 = vpop.f32.mrb[0].mxu0
    %454 = vdwg.mxu0
    %s455 = smul.u32 %s52, 16
    %s456 = scalar_lea.vmem [#allocation2], %s455
    %s457 = scalar_lea.sflag [#allocation3], %s52
    %s458 = smul.u32 16, 1
    %s459 = sshll.u32 %s458, 4
    %460 = dma.done %s457, %s459
    %v461 = vld [vmem:[%s456] sm:$0xff]
    %v462 = vld [vmem:[%s456 + $0x8] sm:$0xff]
    %v463 = vadd.f32 %v461, %v447
    %v464 = vadd.f32 %v462, %v452
    %465 = vst [vmem:[#allocation6] sm:$0xff] %v463
    %466 = vst [vmem:[#allocation6 + $0x8] sm:$0xff] %v464
    // Predicated region
    $region96: #{tpu_custom_call.1} parent=1 // pred_check
      _
    $region97: #{tpu_custom_call.1} parent=1 // pred_check_branch
      %468 = sbr.rel (0) target = $region99
    $region98: #{tpu_custom_call.1} parent=1 // pred_region
      %s469 = sadd.s32 0, 0
      %s470 = smul.u32 2, %s469
      %s472 = ssub.s32 256, 256
      %473 = vsyncadd [#allocation7], %s472
      %s474 = smul.addr %s470, 128
      %s475 = scalar_lea.hbm %s4, %s474
      %s476 = sshll.u32 [#allocation6], 4
      %s477 = int_to_ptr.vmem [resolvable:$true] %s476
      %482 = dma.vmem_to_hbm [thread:$0]  %s477, 256, %s475, [#allocation7], 128, 128, 8
    $region99: #{tpu_custom_call.1} parent=1 // pred_fallthru
      _
    // Predicated region
    $region100: #{tpu_custom_call.1} parent=1 // pred_check
      _
    $region101: #{tpu_custom_call.1} parent=1 // pred_check_branch
      %484 = sbr.rel (0) target = $region103
    $region102: #{tpu_custom_call.1} parent=1 // pred_region
      %485 = dma.done [#allocation7], 256
    $region103: #{tpu_custom_call.1} parent=1 // pred_fallthru
      _
    %486 = vsyncpa [#allocation7], 1
  %487 = vsyncmov [#allocation3]
  %s488 = vpop.sfrf %487
  %p489 = scmp.eq.s32.totalorder %s488, 0
  %p490 = pneg %p489
  %492 = shalt.err (%p490)
  %s493 = scalar_lea.sflag [#allocation3], 1
  %494 = vsyncmov %s493
  %s495 = vpop.sfrf %494
  %p496 = scmp.eq.s32.totalorder %s495, 0
  %p497 = pneg %p496
  %499 = shalt.err (%p497)

</llo_original>
